<compile_context>
chip_gen: v7x
topology: tpu7x:2x2x1
jax: 0.10.0
libtpu: 0.0.40
codegen_flags: <defaults>
</compile_context>

<pallas_src>
import functools

import jax
import jax.numpy as jnp
from jax.experimental import pallas as pl
from jax.experimental.pallas import tpu as pltpu


def _round_up(v, m):
    return ((v + m - 1) // m) * m


# ---------------------------------------------------------------------------
# Kernel body
# ---------------------------------------------------------------------------
def _encoder_kernel(x_ref, w0_ref, b0_ref, w1_ref, b1_ref, wh_ref, bh_ref,
                    mulv_ref, pi_ref, *, mulv_cols):
    # x tile arrives bf16 (cast upstream) -> straight into the MXU.
    x = x_ref[...]

    # fc0 + ReLU  (Dropout is identity in eval mode)
    h0 = jnp.dot(x, w0_ref[...], preferred_element_type=jnp.float32) + b0_ref[...]
    h0 = jnp.maximum(h0, 0.0)

    # fc1 + ReLU
    h1 = jnp.dot(h0.astype(jnp.bfloat16), w1_ref[...],
                 preferred_element_type=jnp.float32) + b1_ref[...]
    h1 = jnp.maximum(h1, 0.0)

    # Fused heads: columns = [mu | logvar | zero-pad]  ++  [pi_logits | -1e30-pad]
    # Both regions are multiples of 128 lanes, so every split/store below is
    # lane-aligned and lane-dense.
    y = jnp.dot(h1.astype(jnp.bfloat16), wh_ref[...],
                preferred_element_type=jnp.float32) + bh_ref[...]

    # Region store #1: mu|logvar slab (no concatenate, no extra VMEM temporary).
    mulv_ref[...] = y[:, :mulv_cols]

    # Region store #2: softmax over the pi logits.  Pad lanes carry bias -1e30,
    # so exp() underflows to exactly 0 and the softmax equals the K-way softmax.
    logits = y[:, mulv_cols:]
    m = jnp.max(logits, axis=-1, keepdims=True)
    e = jnp.exp(logits - m)
    # Exact divide (not approx reciprocal): pi may feed a log-likelihood downstream.
    pi_ref[...] = e / jnp.sum(e, axis=-1, keepdims=True)


# ---------------------------------------------------------------------------
# One-time parameter preparation (hoisted out of the per-call path)
# ---------------------------------------------------------------------------
def prepare_params(params, n_components, latent_dim):
    """Pad hidden / head dims to multiples of 128, fuse the three heads, cast to bf16.

    `params` holds weights in [in, out] layout (transposed vs. torch nn.Linear) and
    1-D biases (as nn.Linear stores them).  Padding is mathematically inert:
    zero weight rows/cols + zero bias -> zero activations; pi pad lanes get -1e30
    bias so their softmax contribution is exactly 0 (bh MUST stay f32 for this).
    """
    w0, b0, w1, b1, wmu, bmu, wlv, blv, wpi, bpi = params
    row = lambda b: jnp.asarray(b, jnp.float32).reshape(1, -1)

    h2 = w0.shape[1]
    hid = w1.shape[1]
    K, L = n_components, latent_dim
    KL = K * L

    h2_p = _round_up(h2, 128)
    hid_p = _round_up(hid, 128)
    mulv_p = _round_up(2 * KL, 128)
    k_p = _round_up(K, 128)

    w0p = jnp.pad(w0, ((0, 0), (0, h2_p - h2))).astype(jnp.bfloat16)
    b0p = jnp.pad(row(b0), ((0, 0), (0, h2_p - h2)))                       # f32
    w1p = jnp.pad(w1, ((0, h2_p - h2), (0, hid_p - hid))).astype(jnp.bfloat16)
    b1p = jnp.pad(row(b1), ((0, 0), (0, hid_p - hid)))                     # f32

    wmulv = jnp.concatenate([wmu, wlv], axis=1)                            # [hid, 2KL]
    wmulv = jnp.pad(wmulv, ((0, hid_p - hid), (0, mulv_p - 2 * KL)))
    wpi_p = jnp.pad(wpi, ((0, hid_p - hid), (0, k_p - K)))
    wh = jnp.concatenate([wmulv, wpi_p], axis=1).astype(jnp.bfloat16)      # [hid_p, mulv_p+k_p]

    bmulv = jnp.pad(jnp.concatenate([row(bmu), row(blv)], axis=1),
                    ((0, 0), (0, mulv_p - 2 * KL)))
    bpi_p = jnp.pad(row(bpi), ((0, 0), (0, k_p - K)), constant_values=-1e30)
    bh = jnp.concatenate([bmulv, bpi_p], axis=1)                           # f32 (keep f32!)

    return (w0p, b0p, w1p, b1p, wh, bh)


# ---------------------------------------------------------------------------
# Forward
# ---------------------------------------------------------------------------
def _resident_spec(arr):
    """VMEM-resident operand: constant index_map; single-buffered (no waste)."""
    index_map = lambda i: (0, 0)
    try:
        return pl.BlockSpec(arr.shape, index_map, pipeline_mode=pl.Buffered(1))
    except TypeError:  # older BlockSpec without pipeline_mode kwarg
        return pl.BlockSpec(arr.shape, index_map)


@functools.partial(jax.jit, static_argnames=("n_components", "latent_dim", "block_batch"))
def bulk_encoder_forward(x, prepared, *, n_components, latent_dim, block_batch=512):
    """Returns (mu [B,K,L], logvar [B,K,L], pi [B,K])."""
    w0p, b0p, w1p, b1p, wh, bh = prepared
    B, din = x.shape
    K, L = n_components, latent_dim
    KL = K * L

    h2_p = w0p.shape[1]
    hid_p = w1p.shape[1]
    mulv_p = _round_up(2 * KL, 128)
    k_p = _round_up(K, 128)

    # ---- batch tile: bf16 sublane alignment (16); for B > 256 keep M a multiple of
    # 256 (MXU tile) and guarantee >= 2 grid steps so both v7x TCs get work.
    if B > 256:
        TB = min(_round_up(block_batch, 256), _round_up(pl.cdiv(B, 2), 256))
    else:
        TB = _round_up(B, 16)
    B_pad = _round_up(B, TB)
    grid = (B_pad // TB,)

    # Stream x in bf16 (half the DMA traffic, no in-kernel cast).  Pad the batch so
    # every tile is full (padded rows are zeros -> finite math, sliced off below).
    xb = x.astype(jnp.bfloat16)
    if B_pad != B:
        xb = jnp.pad(xb, ((0, B_pad - B), (0, 0)))

    # ---- generation-aware VMEM budget (no double-counting of buffer factors).
    try:
        vmem_cap = int(pltpu.get_tpu_info().vmem_capacity_bytes)
    except Exception:
        vmem_cap = 64 * 1024 * 1024
    stream_bytes = 2 * TB * din * 2 + 2 * TB * (mulv_p + k_p) * 4      # dbl-buffered x/out
    weight_bytes = ((w0p.size + w1p.size + wh.size) * 2                # single-buffered
                    + (b0p.size + b1p.size + bh.size) * 4)
    scratch_bytes = 3 * TB * (h2_p + hid_p + mulv_p + k_p) * 4         # f32 temporaries
    needed = stream_bytes + weight_bytes + scratch_bytes
    vmem_limit = int(min(max(needed, 32 * 1024 * 1024), 0.8 * vmem_cap))

    kernel = functools.partial(_encoder_kernel, mulv_cols=mulv_p)

    mulv, pi_pad = pl.pallas_call(
        kernel,
        out_shape=(jax.ShapeDtypeStruct((B_pad, mulv_p), jnp.float32),
                   jax.ShapeDtypeStruct((B_pad, k_p), jnp.float32)),
        grid=grid,
        in_specs=[
            pl.BlockSpec((TB, din), lambda i: (i, 0)),    # streamed x tile (bf16)
            _resident_spec(w0p), _resident_spec(b0p),
            _resident_spec(w1p), _resident_spec(b1p),
            _resident_spec(wh), _resident_spec(bh),
        ],
        out_specs=(
            pl.BlockSpec((TB, mulv_p), lambda i: (i, 0)),
            pl.BlockSpec((TB, k_p), lambda i: (i, 0)),
        ),
        compiler_params=pltpu.CompilerParams(
            dimension_semantics=("parallel",),
            vmem_limit_bytes=vmem_limit),
    )(xb, w0p, b0p, w1p, b1p, wh, bh)

    # Thin, jit-fused un-padding (no extra full HBM round trip outside this jit).
    mu = mulv[:B, :KL].reshape(B, K, L)
    logvar = mulv[:B, KL:2 * KL].reshape(B, K, L)
    pi = pi_pad[:B, :K]
    return mu, logvar, pi


# ---------------------------------------------------------------------------
# Synthetic params / reference
# ---------------------------------------------------------------------------
def init_params(key, input_dim, hidden_dim, latent_dim, n_components):
    """Deterministic synthetic parameters.  Weights are [in, out]; biases are 1-D
    (matching torch nn.Linear's bias layout)."""
    h2 = hidden_dim // 2
    shapes = [
        (input_dim, h2), (h2,),                                              # fc0
        (h2, hidden_dim), (hidden_dim,),                                     # fc1
        (hidden_dim, n_components * latent_dim), (n_components * latent_dim,),  # fc_mu
        (hidden_dim, n_components * latent_dim), (n_components * latent_dim,),  # fc_logvar
        (hidden_dim, n_components), (n_components,),                         # fc_pi
    ]
    keys = jax.random.split(key, len(shapes))
    return tuple(0.05 * jax.random.normal(k, s, dtype=jnp.float32)
                 for k, s in zip(keys, shapes))


def _reference_forward(x, params, n_components, latent_dim):
    """Pure-JAX reference mimicking the kernel's bf16-matmul / f32-accumulate math."""
    w0, b0, w1, b1, wmu, bmu, wlv, blv, wpi, bpi = params
    bf = jnp.bfloat16

    def mm(a, w):
        return jnp.dot(a.astype(bf), w.astype(bf), preferred_element_type=jnp.float32)

    h0 = jnp.maximum(mm(x, w0) + b0, 0.0)
    h1 = jnp.maximum(mm(h0, w1) + b1, 0.0)
    mu = (mm(h1, wmu) + bmu).reshape(-1, n_components, latent_dim)
    lv = (mm(h1, wlv) + blv).reshape(-1, n_components, latent_dim)
    pi = jax.nn.softmax(mm(h1, wpi) + bpi, axis=-1)
    return mu, lv, pi


if __name__ == "__main__":
    # Small shapes consistent with the module structure.
    batch = 8
    input_dim = 128
    hidden_dim = 64        # hidden_dim // 2 = 32
    latent_dim = 16
    n_components = 4

    key = jax.random.PRNGKey(0)
    kx, kp = jax.random.split(key)
    x = jax.random.normal(kx, (batch, input_dim), dtype=jnp.float32)
    params = init_params(kp, input_dim, hidden_dim, latent_dim, n_components)

    # One-time weight prep (padding / head fusion / bf16 cast), outside the hot path.
    prepared = jax.tree_util.tree_map(
        jax.block_until_ready, prepare_params(params, n_components, latent_dim))

    mu, logvar, pi = bulk_encoder_forward(
        x, prepared, n_components=n_components, latent_dim=latent_dim)
    jax.block_until_ready((mu, logvar, pi))

    assert mu.shape == (batch, n_components, latent_dim)
    assert logvar.shape == (batch, n_components, latent_dim)
    assert pi.shape == (batch, n_components)
    # softmax rows sum to 1 (exact divide -> tight tolerance)
    assert bool(jnp.allclose(jnp.sum(pi, axis=-1), 1.0, atol=1e-3))

    # correctness vs pure-JAX reference (bf16 matmul path)
    mu_r, lv_r, pi_r = _reference_forward(x, params, n_components, latent_dim)
    assert bool(jnp.allclose(mu, mu_r, atol=2e-2, rtol=2e-2))
    assert bool(jnp.allclose(logvar, lv_r, atol=2e-2, rtol=2e-2))
    assert bool(jnp.allclose(pi, pi_r, atol=2e-2))

    print("KERNEL_OK")
</pallas_src>

<mosaic_0001>
module attributes {stable_mosaic.version = 11 : i64} {
  func.func @_encoder_kernel(%arg0: i32, %arg1: memref<16x128xbf16, #tpu.memory_space<vmem>>, %arg2: memref<128x128xbf16, #tpu.memory_space<vmem>>, %arg3: memref<1x128xf32, #tpu.memory_space<vmem>>, %arg4: memref<128x128xbf16, #tpu.memory_space<vmem>>, %arg5: memref<1x128xf32, #tpu.memory_space<vmem>>, %arg6: memref<128x256xbf16, #tpu.memory_space<vmem>>, %arg7: memref<1x256xf32, #tpu.memory_space<vmem>>, %arg8: memref<16x128xf32, #tpu.memory_space<vmem>>, %arg9: memref<16x128xf32, #tpu.memory_space<vmem>>) attributes {dimension_semantics = [#tpu.dimension_semantics<parallel>], iteration_bounds = array<i64: 1>, scalar_prefetch = 0 : i64, scratch_operands = 0 : i64, tpu.core_type = #tpu.core_type<tc>, window_params = [{transform_indices = @transform_0, window_bounds = array<i64: 16, 128>}, {pipeline_mode = #tpu.pipeline_mode<synchronous>, transform_indices = @transform_1, window_bounds = array<i64: 128, 128>}, {pipeline_mode = #tpu.pipeline_mode<synchronous>, transform_indices = @transform_2, window_bounds = array<i64: 1, 128>}, {pipeline_mode = #tpu.pipeline_mode<synchronous>, transform_indices = @transform_3, window_bounds = array<i64: 128, 128>}, {pipeline_mode = #tpu.pipeline_mode<synchronous>, transform_indices = @transform_4, window_bounds = array<i64: 1, 128>}, {pipeline_mode = #tpu.pipeline_mode<synchronous>, transform_indices = @transform_5, window_bounds = array<i64: 128, 256>}, {pipeline_mode = #tpu.pipeline_mode<synchronous>, transform_indices = @transform_6, window_bounds = array<i64: 1, 256>}, {transform_indices = @transform_7, window_bounds = array<i64: 16, 128>}, {transform_indices = @transform_8, window_bounds = array<i64: 16, 128>}]} {
    %c0 = arith.constant 0 : index
    %c0_0 = arith.constant 0 : index
    %0 = vector.load %arg1[%c0, %c0_0] : memref<16x128xbf16, #tpu.memory_space<vmem>>, vector<16x128xbf16>
    %c0_1 = arith.constant 0 : index
    %c0_2 = arith.constant 0 : index
    %1 = vector.load %arg2[%c0_1, %c0_2] : memref<128x128xbf16, #tpu.memory_space<vmem>>, vector<128x128xbf16>
    %cst = arith.constant dense<0.000000e+00> : vector<16x128xf32>
    %2 = tpu.matmul %0, %1, %cst {dimension_numbers = #tpu.dot_dimension_numbers<[1], [0], [0], [1], [0, 0, 1, 1], [], []>} : vector<16x128xbf16>, vector<128x128xbf16>, vector<16x128xf32> -> vector<16x128xf32>
    %c0_3 = arith.constant 0 : index
    %c0_4 = arith.constant 0 : index
    %3 = vector.load %arg3[%c0_3, %c0_4] : memref<1x128xf32, #tpu.memory_space<vmem>>, vector<1x128xf32>
    %4 = vector.broadcast %3 : vector<1x128xf32> to vector<16x128xf32>
    %5 = arith.addf %2, %4 : vector<16x128xf32>
    %cst_5 = arith.constant 0.000000e+00 : f32
    %6 = vector.broadcast %cst_5 : f32 to vector<16x128xf32>
    %7 = arith.maximumf %5, %6 : vector<16x128xf32>
    %8 = arith.truncf %7 : vector<16x128xf32> to vector<16x128xbf16>
    %c0_6 = arith.constant 0 : index
    %c0_7 = arith.constant 0 : index
    %9 = vector.load %arg4[%c0_6, %c0_7] : memref<128x128xbf16, #tpu.memory_space<vmem>>, vector<128x128xbf16>
    %cst_8 = arith.constant dense<0.000000e+00> : vector<16x128xf32>
    %10 = tpu.matmul %8, %9, %cst_8 {dimension_numbers = #tpu.dot_dimension_numbers<[1], [0], [0], [1], [0, 0, 1, 1], [], []>} : vector<16x128xbf16>, vector<128x128xbf16>, vector<16x128xf32> -> vector<16x128xf32>
    %c0_9 = arith.constant 0 : index
    %c0_10 = arith.constant 0 : index
    %11 = vector.load %arg5[%c0_9, %c0_10] : memref<1x128xf32, #tpu.memory_space<vmem>>, vector<1x128xf32>
    %12 = vector.broadcast %11 : vector<1x128xf32> to vector<16x128xf32>
    %13 = arith.addf %10, %12 : vector<16x128xf32>
    %cst_11 = arith.constant 0.000000e+00 : f32
    %14 = vector.broadcast %cst_11 : f32 to vector<16x128xf32>
    %15 = arith.maximumf %13, %14 : vector<16x128xf32>
    %16 = arith.truncf %15 : vector<16x128xf32> to vector<16x128xbf16>
    %c0_12 = arith.constant 0 : index
    %c0_13 = arith.constant 0 : index
    %17 = vector.load %arg6[%c0_12, %c0_13] : memref<128x256xbf16, #tpu.memory_space<vmem>>, vector<128x256xbf16>
    %cst_14 = arith.constant dense<0.000000e+00> : vector<16x256xf32>
    %18 = tpu.matmul %16, %17, %cst_14 {dimension_numbers = #tpu.dot_dimension_numbers<[1], [0], [0], [1], [0, 0, 1, 1], [], []>} : vector<16x128xbf16>, vector<128x256xbf16>, vector<16x256xf32> -> vector<16x256xf32>
    %c0_15 = arith.constant 0 : index
    %c0_16 = arith.constant 0 : index
    %19 = vector.load %arg7[%c0_15, %c0_16] : memref<1x256xf32, #tpu.memory_space<vmem>>, vector<1x256xf32>
    %20 = vector.broadcast %19 : vector<1x256xf32> to vector<16x256xf32>
    %21 = arith.addf %18, %20 : vector<16x256xf32>
    %22 = vector.extract_strided_slice %21 {offsets = [0, 0], sizes = [16, 128], strides = [1, 1]} : vector<16x256xf32> to vector<16x128xf32>
    %c0_17 = arith.constant 0 : index
    %c0_18 = arith.constant 0 : index
    %23 = vector.load %arg8[%c0_17, %c0_18] : memref<16x128xf32, #tpu.memory_space<vmem>>, vector<16x128xf32>
    tpu.vector_store %arg8[%c0_17, %c0_18], %22 {strides = array<i32>} : memref<16x128xf32, #tpu.memory_space<vmem>>, vector<16x128xf32>,
    %24 = vector.extract_strided_slice %21 {offsets = [0, 128], sizes = [16, 128], strides = [1, 1]} : vector<16x256xf32> to vector<16x128xf32>
    %cst_19 = arith.constant dense<0xFF800000> : vector<16xf32>
    %25 = vector.multi_reduction <maximumf>, %24, %cst_19 [1] : vector<16x128xf32> to vector<16xf32>
    %26 = vector.shape_cast %25 : vector<16xf32> to vector<16x1xf32>
    %27 = vector.broadcast %26 : vector<16x1xf32> to vector<16x128xf32>
    %28 = arith.subf %24, %27 : vector<16x128xf32>
    %29 = math.exp %28 : vector<16x128xf32>
    %cst_20 = arith.constant dense<0.000000e+00> : vector<16xf32>
    %30 = vector.multi_reduction <add>, %29, %cst_20 [1] : vector<16x128xf32> to vector<16xf32>
    %31 = vector.shape_cast %30 : vector<16xf32> to vector<16x1xf32>
    %32 = vector.broadcast %31 : vector<16x1xf32> to vector<16x128xf32>
    %33 = arith.divf %29, %32 : vector<16x128xf32>
    %c0_21 = arith.constant 0 : index
    %c0_22 = arith.constant 0 : index
    %34 = vector.load %arg9[%c0_21, %c0_22] : memref<16x128xf32, #tpu.memory_space<vmem>>, vector<16x128xf32>
    tpu.vector_store %arg9[%c0_21, %c0_22], %33 {strides = array<i32>} : memref<16x128xf32, #tpu.memory_space<vmem>>, vector<16x128xf32>,
    return
  }
  func.func @transform_0(%arg0: i32) -> (i32, i32) {
    %c0_i32 = arith.constant 0 : i32
    %c0_i32_0 = arith.constant 0 : i32
    return %arg0, %c0_i32 : i32, i32
  }
  func.func @transform_1(%arg0: i32) -> (i32, i32) {
    %c0_i32 = arith.constant 0 : i32
    %c0_i32_0 = arith.constant 0 : i32
    %c0_i32_1 = arith.constant 0 : i32
    return %c0_i32, %c0_i32_0 : i32, i32
  }
  func.func @transform_2(%arg0: i32) -> (i32, i32) {
    %c0_i32 = arith.constant 0 : i32
    %c0_i32_0 = arith.constant 0 : i32
    %c0_i32_1 = arith.constant 0 : i32
    return %c0_i32, %c0_i32_0 : i32, i32
  }
  func.func @transform_3(%arg0: i32) -> (i32, i32) {
    %c0_i32 = arith.constant 0 : i32
    %c0_i32_0 = arith.constant 0 : i32
    %c0_i32_1 = arith.constant 0 : i32
    return %c0_i32, %c0_i32_0 : i32, i32
  }
  func.func @transform_4(%arg0: i32) -> (i32, i32) {
    %c0_i32 = arith.constant 0 : i32
    %c0_i32_0 = arith.constant 0 : i32
    %c0_i32_1 = arith.constant 0 : i32
    return %c0_i32, %c0_i32_0 : i32, i32
  }
  func.func @transform_5(%arg0: i32) -> (i32, i32) {
    %c0_i32 = arith.constant 0 : i32
    %c0_i32_0 = arith.constant 0 : i32
    %c0_i32_1 = arith.constant 0 : i32
    return %c0_i32, %c0_i32_0 : i32, i32
  }
  func.func @transform_6(%arg0: i32) -> (i32, i32) {
    %c0_i32 = arith.constant 0 : i32
    %c0_i32_0 = arith.constant 0 : i32
    %c0_i32_1 = arith.constant 0 : i32
    return %c0_i32, %c0_i32_0 : i32, i32
  }
  func.func @transform_7(%arg0: i32) -> (i32, i32) {
    %c0_i32 = arith.constant 0 : i32
    %c0_i32_0 = arith.constant 0 : i32
    return %arg0, %c0_i32 : i32, i32
  }
  func.func @transform_8(%arg0: i32) -> (i32, i32) {
    %c0_i32 = arith.constant 0 : i32
    %c0_i32_0 = arith.constant 0 : i32
    return %arg0, %c0_i32 : i32, i32
  }
}

</mosaic_0001>

<llo_original>
// kernel: bulk_encoder_forward.1
$region0: #{bulk_encoder_forward.1}
  #allocation0 [shape = 'u32[]', space=smem, size = 0x4, offset = 0x4, fixed_abs, tag = 'smem constant byte address 0x4 - core index']
  #allocation1 [shape = 'u32[144,128]{1,0:T(1,128)}', space=vmem, size = 0x12000, scoped, tag = 'internal scratch']
  %s0 = inlined_call_operand.vmem [shape: bf16[16,128], index: 0, kind: input, shape index: {}]
  %s1 = inlined_call_operand.hbm [shape: bf16[128,128], index: 1, kind: input, shape index: {}]
  %s2 = inlined_call_operand.vmem [shape: f32[1,128], index: 2, kind: input, shape index: {}]
  %s3 = inlined_call_operand.hbm [shape: bf16[128,128], index: 3, kind: input, shape index: {}]
  %s4 = inlined_call_operand.vmem [shape: f32[1,128], index: 4, kind: input, shape index: {}]
  %s5 = inlined_call_operand.hbm [shape: bf16[128,256], index: 5, kind: input, shape index: {}]
  %s6 = inlined_call_operand.vmem [shape: f32[1,256], index: 6, kind: input, shape index: {}]
  %s7 = inlined_call_operand.vmem [shape: f32[16,128], index: 7, kind: output, shape index: {0}]
  %s8 = inlined_call_operand.vmem [shape: f32[16,128], index: 8, kind: output, shape index: {1}]
  %9 = xla_tuple %s7, %s8
  %s10 = sld [smem:[#allocation0]]
  $region58: #{bulk_encoder_forward.1} parent=0
    _
  %s12 = ssub.s32 1, %s10
  %s13 = scalar_select 0, %s12, %s10
  $region1: #{bulk_encoder_forward.1} parent=0
    #allocation2 [shape = 'u8[32768]{0}', space=vmem, size = 0x8000, scoped, tag = 'input window, operand 1, single buffered']
    #allocation3 [shape = 's32[1]{0}', space=sflag, size = 0x4, scoped, tag = 'scoped memory for bulk_encoder_forward.1']
    #allocation4 [shape = 'u8[32768]{0}', space=vmem, size = 0x8000, scoped, tag = 'input window, operand 3, single buffered']
    #allocation5 [shape = 's32[1]{0}', space=sflag, size = 0x4, scoped, tag = 'scoped memory for bulk_encoder_forward.1']
    #allocation6 [shape = 'u8[65536]{0}', space=vmem, size = 0x10000, scoped, tag = 'input window, operand 5, single buffered']
    %14 = vsyncpa [#allocation3], 0
    %15 = vsyncpa [#allocation5], 0
    // Predicated region
    $region2: #{bulk_encoder_forward.1} parent=1 // pred_check
      _
    $region3: #{bulk_encoder_forward.1} parent=1 // pred_check_branch
      %17 = sbr.rel (0) target = $region5
    $region4: #{bulk_encoder_forward.1} parent=1 // pred_region
      _
    $region5: #{bulk_encoder_forward.1} parent=1 // pred_fallthru
      _
    // Predicated region
    $region6: #{bulk_encoder_forward.1} parent=1 // pred_check
      _
    $region7: #{bulk_encoder_forward.1} parent=1 // pred_check_branch
      %19 = sbr.rel (0) target = $region9
    $region8: #{bulk_encoder_forward.1} parent=1 // pred_region
      %s21 = ssub.s32 1024, 1024
      %22 = vsyncadd [#allocation3], %s21
      %s23 = sshll.u32 [#allocation2], 4
      %s24 = int_to_ptr.vmem [resolvable:$true] %s23
      %29 = dma.hbm_to_vmem [thread:$0]  %s1, 1024, %s24, [#allocation3], 64, 64, 4
    $region9: #{bulk_encoder_forward.1} parent=1 // pred_fallthru
      _
    // Predicated region
    $region10: #{bulk_encoder_forward.1} parent=1 // pred_check
      _
    $region11: #{bulk_encoder_forward.1} parent=1 // pred_check_branch
      %31 = sbr.rel (0) target = $region13
    $region12: #{bulk_encoder_forward.1} parent=1 // pred_region
      _
    $region13: #{bulk_encoder_forward.1} parent=1 // pred_fallthru
      _
    // Predicated region
    $region14: #{bulk_encoder_forward.1} parent=1 // pred_check
      _
    $region15: #{bulk_encoder_forward.1} parent=1 // pred_check_branch
      %33 = sbr.rel (0) target = $region17
    $region16: #{bulk_encoder_forward.1} parent=1 // pred_region
      %s35 = ssub.s32 1024, 1024
      %36 = vsyncadd [#allocation5], %s35
      %s37 = sshll.u32 [#allocation4], 4
      %s38 = int_to_ptr.vmem [resolvable:$true] %s37
      %43 = dma.hbm_to_vmem [thread:$0]  %s3, 1024, %s38, [#allocation5], 64, 64, 4
    $region17: #{bulk_encoder_forward.1} parent=1 // pred_fallthru
      _
    // Predicated region
    $region18: #{bulk_encoder_forward.1} parent=1 // pred_check
      _
    $region19: #{bulk_encoder_forward.1} parent=1 // pred_check_branch
      %45 = sbr.rel (0) target = $region21
    $region20: #{bulk_encoder_forward.1} parent=1 // pred_region
      _
    $region21: #{bulk_encoder_forward.1} parent=1 // pred_fallthru
      _
    // Predicated region
    $region22: #{bulk_encoder_forward.1} parent=1 // pred_check
      _
    $region23: #{bulk_encoder_forward.1} parent=1 // pred_check_branch
      %47 = sbr.rel (0) target = $region25
    $region24: #{bulk_encoder_forward.1} parent=1 // pred_region
      %s49 = ssub.s32 2048, 2048
      %50 = vsyncadd [#allocation5], %s49
      %s51 = sshll.u32 [#allocation6], 4
      %s52 = int_to_ptr.vmem [resolvable:$true] %s51
      %57 = dma.hbm_to_vmem [thread:$0]  %s5, 2048, %s52, [#allocation5], 128, 128, 8
    $region25: #{bulk_encoder_forward.1} parent=1 // pred_fallthru
      _
    // Predicated region
    $region26: #{bulk_encoder_forward.1} parent=1 // pred_check
      _
    $region27: #{bulk_encoder_forward.1} parent=1 // pred_check_branch
      %59 = sbr.rel (0) target = $region29
    $region28: #{bulk_encoder_forward.1} parent=1 // pred_region
      _
    $region29: #{bulk_encoder_forward.1} parent=1 // pred_fallthru
      _
    // Predicated region
    $region30: #{bulk_encoder_forward.1} parent=1 // pred_check
      _
    $region31: #{bulk_encoder_forward.1} parent=1 // pred_check_branch
      %61 = sbr.rel (0) target = $region33
    $region32: #{bulk_encoder_forward.1} parent=1 // pred_region
      %62 = dma.done [#allocation3], 1024
    $region33: #{bulk_encoder_forward.1} parent=1 // pred_fallthru
      _
    // Predicated region
    $region34: #{bulk_encoder_forward.1} parent=1 // pred_check
      _
    $region35: #{bulk_encoder_forward.1} parent=1 // pred_check_branch
      %64 = sbr.rel (0) target = $region37
    $region36: #{bulk_encoder_forward.1} parent=1 // pred_region
      %65 = dma.done [#allocation5], 1024
    $region37: #{bulk_encoder_forward.1} parent=1 // pred_fallthru
      _
    // Predicated region
    $region38: #{bulk_encoder_forward.1} parent=1 // pred_check
      _
    $region39: #{bulk_encoder_forward.1} parent=1 // pred_check_branch
      %67 = sbr.rel (0) target = $region41
    $region40: #{bulk_encoder_forward.1} parent=1 // pred_region
      %68 = dma.done [#allocation5], 2048
    $region41: #{bulk_encoder_forward.1} parent=1 // pred_fallthru
      _
    %v70 = vld [vmem:[%s0] sm:$0xf]
    %v71 = vld [vmem:[%s0 + $0x4] sm:$0xf]
    %v72 = vld [vmem:[#allocation2] sm:$0xf]
    %v73 = vld [vmem:[#allocation2 + $0x4] sm:$0xf]
    %v74 = vld [vmem:[#allocation2 + $0x8] sm:$0xf]
    %v75 = vld [vmem:[#allocation2 + $0xc] sm:$0xf]
    %v76 = vld [vmem:[#allocation2 + $0x10] sm:$0xf]
    %v77 = vld [vmem:[#allocation2 + $0x14] sm:$0xf]
    %v78 = vld [vmem:[#allocation2 + $0x18] sm:$0xf]
    %v79 = vld [vmem:[#allocation2 + $0x1c] sm:$0xf]
    %v80 = vld [vmem:[#allocation2 + $0x20] sm:$0xf]
    %v81 = vld [vmem:[#allocation2 + $0x24] sm:$0xf]
    %v82 = vld [vmem:[#allocation2 + $0x28] sm:$0xf]
    %v83 = vld [vmem:[#allocation2 + $0x2c] sm:$0xf]
    %v84 = vld [vmem:[#allocation2 + $0x30] sm:$0xf]
    %v85 = vld [vmem:[#allocation2 + $0x34] sm:$0xf]
    %v86 = vld [vmem:[#allocation2 + $0x38] sm:$0xf]
    %v87 = vld [vmem:[#allocation2 + $0x3c] sm:$0xf]
    %v88 = vld [vmem:[%s2] sm:$0x1]
    %v90 = vlaneseq
    %v91 = vshrl.u32 %v90, 7
    %v92 = vsub.s32 0, %v91
    %v93 = vrot.slane %v88, %v92
    %v97 = vunpack.c.l.b16 %v70
    %v98 = vunpack.c.l.b16 %v71
    %v99 = vpack.c.b16 %v98, %v97
    %v117 = vunpack.c.l.b16 %v72
    %v118 = vunpack.c.l.b16 %v73
    %v119 = vunpack.c.l.b16 %v74
    %v120 = vunpack.c.l.b16 %v75
    %v121 = vunpack.c.l.b16 %v76
    %v122 = vunpack.c.l.b16 %v77
    %v123 = vunpack.c.l.b16 %v78
    %v124 = vunpack.c.l.b16 %v79
    %v125 = vunpack.c.l.b16 %v80
    %v126 = vunpack.c.l.b16 %v81
    %v127 = vunpack.c.l.b16 %v82
    %v128 = vunpack.c.l.b16 %v83
    %v129 = vunpack.c.l.b16 %v84
    %v130 = vunpack.c.l.b16 %v85
    %v131 = vunpack.c.l.b16 %v86
    %v132 = vunpack.c.l.b16 %v87
    %v133 = vpack.c.b16 %v118, %v117
    %v134 = vpack.c.b16 %v120, %v119
    %v135 = vpack.c.b16 %v122, %v121
    %v136 = vpack.c.b16 %v124, %v123
    %v137 = vpack.c.b16 %v126, %v125
    %v138 = vpack.c.b16 %v128, %v127
    %v139 = vpack.c.b16 %v130, %v129
    %v140 = vpack.c.b16 %v132, %v131
    %149 = vmatprep.subr.bf16.mxu0 0
    %150 = vmatpush1.bf16.msra.mxu0 %v133
    %151 = vmatprep.subr.bf16.mxu0 0
    %152 = vmatpush1.bf16.msra.mxu0 %v134
    %153 = vmatprep.subr.bf16.mxu0 0
    %154 = vmatpush1.bf16.msra.mxu0 %v135
    %155 = vmatprep.subr.bf16.mxu0 0
    %156 = vmatpush1.bf16.msra.mxu0 %v136
    %157 = vmatprep.subr.bf16.mxu0 0
    %158 = vmatpush1.bf16.msra.mxu0 %v137
    %159 = vmatprep.subr.bf16.mxu0 0
    %160 = vmatpush1.bf16.msra.mxu0 %v138
    %161 = vmatprep.subr.bf16.mxu0 0
    %162 = vmatpush1.bf16.msra.mxu0 %v139
    %163 = vmatprep.subr.bf16.mxu0 0
    %164 = vmatpush1.bf16.msra.mxu0 %v140
    %165 = vmatprep.subr.bf16.mxu0 0
    %166 = vmatpush1.bf16.msra.mxu0 0
    %167 = vmatprep.subr.bf16.mxu0 0
    %168 = vmatpush1.bf16.msra.mxu0 0
    %169 = vmatprep.subr.bf16.mxu0 0
    %170 = vmatpush1.bf16.msra.mxu0 0
    %171 = vmatprep.subr.bf16.mxu0 0
    %172 = vmatpush1.bf16.msra.mxu0 0
    %173 = vmatprep.subr.bf16.mxu0 0
    %174 = vmatpush1.bf16.msra.mxu0 0
    %175 = vmatprep.subr.bf16.mxu0 0
    %176 = vmatpush1.bf16.msra.mxu0 0
    %177 = vmatprep.subr.bf16.mxu0 0
    %178 = vmatpush1.bf16.msra.mxu0 0
    %179 = vmatprep.subr.bf16.mxu0 0
    %180 = vmatpush1.bf16.msra.mxu0 0
    %181 = vmatprep.mubr.bf16.mxu0 0
    %182 = vmatmul.mubr.bf16.gmra.mrb[0].mxu0 %v99
    %v183 = vpop.f32.mrb[0].mxu0
    %v184 = vadd.f32 %v93, %v183
    %v185 = vpop.f32.mrb[0].mxu0
    %v186 = vpop.f32.mrb[0].mxu0
    %v187 = vadd.f32 %v93, %v186
    %v188 = vpop.f32.mrb[0].mxu0
    %189 = vdwg.mxu0
    %v190 = vmax.f32 %v184, 0.0
    %v191 = vmax.f32 %v187, 0.0
    %v192 = vpack.c.bf16 %v191, %v190
    %v193 = vld [vmem:[#allocation4] sm:$0xf]
    %v194 = vld [vmem:[#allocation4 + $0x4] sm:$0xf]
    %v195 = vld [vmem:[#allocation4 + $0x8] sm:$0xf]
    %v196 = vld [vmem:[#allocation4 + $0xc] sm:$0xf]
    %v197 = vld [vmem:[#allocation4 + $0x10] sm:$0xf]
    %v198 = vld [vmem:[#allocation4 + $0x14] sm:$0xf]
    %v199 = vld [vmem:[#allocation4 + $0x18] sm:$0xf]
    %v200 = vld [vmem:[#allocation4 + $0x1c] sm:$0xf]
    %v201 = vld [vmem:[#allocation4 + $0x20] sm:$0xf]
    %v202 = vld [vmem:[#allocation4 + $0x24] sm:$0xf]
    %v203 = vld [vmem:[#allocation4 + $0x28] sm:$0xf]
    %v204 = vld [vmem:[#allocation4 + $0x2c] sm:$0xf]
    %v205 = vld [vmem:[#allocation4 + $0x30] sm:$0xf]
    %v206 = vld [vmem:[#allocation4 + $0x34] sm:$0xf]
    %v207 = vld [vmem:[#allocation4 + $0x38] sm:$0xf]
    %v208 = vld [vmem:[#allocation4 + $0x3c] sm:$0xf]
    %v209 = vld [vmem:[%s4] sm:$0x1]
    %v211 = vlaneseq
    %v212 = vshrl.u32 %v211, 7
    %v213 = vsub.s32 0, %v212
    %v214 = vrot.slane %v209, %v213
    %v232 = vunpack.c.l.b16 %v193
    %v233 = vunpack.c.l.b16 %v194
    %v234 = vunpack.c.l.b16 %v195
    %v235 = vunpack.c.l.b16 %v196
    %v236 = vunpack.c.l.b16 %v197
    %v237 = vunpack.c.l.b16 %v198
    %v238 = vunpack.c.l.b16 %v199
    %v239 = vunpack.c.l.b16 %v200
    %v240 = vunpack.c.l.b16 %v201
    %v241 = vunpack.c.l.b16 %v202
    %v242 = vunpack.c.l.b16 %v203
    %v243 = vunpack.c.l.b16 %v204
    %v244 = vunpack.c.l.b16 %v205
    %v245 = vunpack.c.l.b16 %v206
    %v246 = vunpack.c.l.b16 %v207
    %v247 = vunpack.c.l.b16 %v208
    %v248 = vpack.c.b16 %v233, %v232
    %v249 = vpack.c.b16 %v235, %v234
    %v250 = vpack.c.b16 %v237, %v236
    %v251 = vpack.c.b16 %v239, %v238
    %v252 = vpack.c.b16 %v241, %v240
    %v253 = vpack.c.b16 %v243, %v242
    %v254 = vpack.c.b16 %v245, %v244
    %v255 = vpack.c.b16 %v247, %v246
    %264 = vmatprep.subr.bf16.mxu0 0
    %265 = vmatpush1.bf16.msra.mxu0 %v248
    %266 = vmatprep.subr.bf16.mxu0 0
    %267 = vmatpush1.bf16.msra.mxu0 %v249
    %268 = vmatprep.subr.bf16.mxu0 0
    %269 = vmatpush1.bf16.msra.mxu0 %v250
    %270 = vmatprep.subr.bf16.mxu0 0
    %271 = vmatpush1.bf16.msra.mxu0 %v251
    %272 = vmatprep.subr.bf16.mxu0 0
    %273 = vmatpush1.bf16.msra.mxu0 %v252
    %274 = vmatprep.subr.bf16.mxu0 0
    %275 = vmatpush1.bf16.msra.mxu0 %v253
    %276 = vmatprep.subr.bf16.mxu0 0
    %277 = vmatpush1.bf16.msra.mxu0 %v254
    %278 = vmatprep.subr.bf16.mxu0 0
    %279 = vmatpush1.bf16.msra.mxu0 %v255
    %280 = vmatprep.subr.bf16.mxu0 0
    %281 = vmatpush1.bf16.msra.mxu0 0
    %282 = vmatprep.subr.bf16.mxu0 0
    %283 = vmatpush1.bf16.msra.mxu0 0
    %284 = vmatprep.subr.bf16.mxu0 0
    %285 = vmatpush1.bf16.msra.mxu0 0
    %286 = vmatprep.subr.bf16.mxu0 0
    %287 = vmatpush1.bf16.msra.mxu0 0
    %288 = vmatprep.subr.bf16.mxu0 0
    %289 = vmatpush1.bf16.msra.mxu0 0
    %290 = vmatprep.subr.bf16.mxu0 0
    %291 = vmatpush1.bf16.msra.mxu0 0
    %292 = vmatprep.subr.bf16.mxu0 0
    %293 = vmatpush1.bf16.msra.mxu0 0
    %294 = vmatprep.subr.bf16.mxu0 0
    %295 = vmatpush1.bf16.msra.mxu0 0
    %296 = vmatprep.mubr.bf16.mxu0 0
    %297 = vmatmul.mubr.bf16.gmra.mrb[0].mxu0 %v192
    %v298 = vpop.f32.mrb[0].mxu0
    %v299 = vadd.f32 %v214, %v298
    %v300 = vpop.f32.mrb[0].mxu0
    %v301 = vpop.f32.mrb[0].mxu0
    %v302 = vadd.f32 %v214, %v301
    %v303 = vpop.f32.mrb[0].mxu0
    %304 = vdwg.mxu0
    %v305 = vmax.f32 %v299, 0.0
    %v306 = vmax.f32 %v302, 0.0
    %v307 = vpack.c.bf16 %v306, %v305
    %v308 = vld [vmem:[#allocation6] sm:$0xff]
    %v309 = vld [vmem:[#allocation6 + $0x8] sm:$0xff]
    %v310 = vld [vmem:[#allocation6 + $0x10] sm:$0xff]
    %v311 = vld [vmem:[#allocation6 + $0x18] sm:$0xff]
    %v312 = vld [vmem:[#allocation6 + $0x20] sm:$0xff]
    %v313 = vld [vmem:[#allocation6 + $0x28] sm:$0xff]
    %v314 = vld [vmem:[#allocation6 + $0x30] sm:$0xff]
    %v315 = vld [vmem:[#allocation6 + $0x38] sm:$0xff]
    %v316 = vld [vmem:[#allocation6 + $0x40] sm:$0xff]
    %v317 = vld [vmem:[#allocation6 + $0x48] sm:$0xff]
    %v318 = vld [vmem:[#allocation6 + $0x50] sm:$0xff]
    %v319 = vld [vmem:[#allocation6 + $0x58] sm:$0xff]
    %v320 = vld [vmem:[#allocation6 + $0x60] sm:$0xff]
    %v321 = vld [vmem:[#allocation6 + $0x68] sm:$0xff]
    %v322 = vld [vmem:[#allocation6 + $0x70] sm:$0xff]
    %v323 = vld [vmem:[#allocation6 + $0x78] sm:$0xff]
    %v324 = vld [vmem:[%s6] sm:$0x3]
    %v326 = vlaneseq
    %v327 = vshrl.u32 %v326, 7
    %v328 = vsub.s32 0, %v327
    %v329 = vrot.slane %v324, %v328
    %v330 = vlaneseq
    %v331 = vshrl.u32 %v330, 7
    %v332 = vsub.s32 1, %v331
    %v333 = vrot.slane %v324, %v332
    %v352 = vunpack.c.l.b16 %v308
    %v353 = vunpack.c.h.b16 %v308
    %v354 = vunpack.c.l.b16 %v309
    %v355 = vunpack.c.h.b16 %v309
    %v356 = vunpack.c.l.b16 %v310
    %v357 = vunpack.c.h.b16 %v310
    %v358 = vunpack.c.l.b16 %v311
    %v359 = vunpack.c.h.b16 %v311
    %v360 = vunpack.c.l.b16 %v312
    %v361 = vunpack.c.h.b16 %v312
    %v362 = vunpack.c.l.b16 %v313
    %v363 = vunpack.c.h.b16 %v313
    %v364 = vunpack.c.l.b16 %v314
    %v365 = vunpack.c.h.b16 %v314
    %v366 = vunpack.c.l.b16 %v315
    %v367 = vunpack.c.h.b16 %v315
    %v368 = vunpack.c.l.b16 %v316
    %v369 = vunpack.c.h.b16 %v316
    %v370 = vunpack.c.l.b16 %v317
    %v371 = vunpack.c.h.b16 %v317
    %v372 = vunpack.c.l.b16 %v318
    %v373 = vunpack.c.h.b16 %v318
    %v374 = vunpack.c.l.b16 %v319
    %v375 = vunpack.c.h.b16 %v319
    %v376 = vunpack.c.l.b16 %v320
    %v377 = vunpack.c.h.b16 %v320
    %v378 = vunpack.c.l.b16 %v321
    %v379 = vunpack.c.h.b16 %v321
    %v380 = vunpack.c.l.b16 %v322
    %v381 = vunpack.c.h.b16 %v322
    %v382 = vunpack.c.l.b16 %v323
    %v383 = vunpack.c.h.b16 %v323
    %v384 = vpack.c.b16 %v354, %v352
    %v385 = vpack.c.b16 %v355, %v353
    %v386 = vpack.c.b16 %v358, %v356
    %v387 = vpack.c.b16 %v359, %v357
    %v388 = vpack.c.b16 %v362, %v360
    %v389 = vpack.c.b16 %v363, %v361
    %v390 = vpack.c.b16 %v366, %v364
    %v391 = vpack.c.b16 %v367, %v365
    %v392 = vpack.c.b16 %v370, %v368
    %v393 = vpack.c.b16 %v371, %v369
    %v394 = vpack.c.b16 %v374, %v372
    %v395 = vpack.c.b16 %v375, %v373
    %v396 = vpack.c.b16 %v378, %v376
    %v397 = vpack.c.b16 %v379, %v377
    %v398 = vpack.c.b16 %v382, %v380
    %v399 = vpack.c.b16 %v383, %v381
    %416 = vmatprep.subr.bf16.mxu0 %v385
    %417 = vmatpush1.bf16.msra.mxu0 %v384
    %418 = vmatprep.subr.bf16.mxu0 %v387
    %419 = vmatpush1.bf16.msra.mxu0 %v386
    %420 = vmatprep.subr.bf16.mxu0 %v389
    %421 = vmatpush1.bf16.msra.mxu0 %v388
    %422 = vmatprep.subr.bf16.mxu0 %v391
    %423 = vmatpush1.bf16.msra.mxu0 %v390
    %424 = vmatprep.subr.bf16.mxu0 %v393
    %425 = vmatpush1.bf16.msra.mxu0 %v392
    %426 = vmatprep.subr.bf16.mxu0 %v395
    %427 = vmatpush1.bf16.msra.mxu0 %v394
    %428 = vmatprep.subr.bf16.mxu0 %v397
    %429 = vmatpush1.bf16.msra.mxu0 %v396
    %430 = vmatprep.subr.bf16.mxu0 %v399
    %431 = vmatpush1.bf16.msra.mxu0 %v398
    %432 = vmatprep.subr.bf16.mxu0 0
    %433 = vmatpush1.bf16.msra.mxu0 0
    %434 = vmatprep.subr.bf16.mxu0 0
    %435 = vmatpush1.bf16.msra.mxu0 0
    %436 = vmatprep.subr.bf16.mxu0 0
    %437 = vmatpush1.bf16.msra.mxu0 0
    %438 = vmatprep.subr.bf16.mxu0 0
    %439 = vmatpush1.bf16.msra.mxu0 0
    %440 = vmatprep.subr.bf16.mxu0 0
    %441 = vmatpush1.bf16.msra.mxu0 0
    %442 = vmatprep.subr.bf16.mxu0 0
    %443 = vmatpush1.bf16.msra.mxu0 0
    %444 = vmatprep.subr.bf16.mxu0 0
    %445 = vmatpush1.bf16.msra.mxu0 0
    %446 = vmatprep.subr.bf16.mxu0 0
    %447 = vmatpush1.bf16.msra.mxu0 0
    %448 = vmatprep.mubr.bf16.mxu0 0
    %449 = vmatmul.mubr.bf16.gmra.mrb[0].mxu0 %v307
    %v450 = vpop.f32.mrb[0].mxu0
    %v451 = vadd.f32 %v329, %v450
    %v452 = vpop.f32.mrb[0].mxu0
    %v453 = vadd.f32 %v333, %v452
    %v454 = vpop.f32.mrb[0].mxu0
    %v455 = vadd.f32 %v329, %v454
    %v456 = vpop.f32.mrb[0].mxu0
    %v457 = vadd.f32 %v333, %v456
    %458 = vdwg.mxu0
    %459 = vst [vmem:[%s7] sm:$0xff] %v451
    %460 = vst [vmem:[%s7 + $0x8] sm:$0xff] %v455
    %461 = vmax.xlane.f32.xlu0 %v453
    %v462 = vpop.xlane.xlu0 %461
    %463 = vmax.xlane.f32.xlu0 %v457
    %v464 = vpop.xlane.xlu0 %463
    %v465 = vsub.f32 %v453, %v462
    %v466 = vsub.f32 %v457, %v464
    %v467 = vmul.f32 %v465, 1.442695
    %v468 = vpow.pop %v467
    %v469 = vmul.f32 %v466, 1.442695
    %v470 = vpow.pop %v469
    %471 = vadd.xlane.f32.xlu0 %v468
    %v472 = vpop.xlane.xlu0 %471
    %473 = vadd.xlane.f32.xlu0 %v470
    %v474 = vpop.xlane.xlu0 %473
    %v475 = vrcp.pop %v472
    %v476 = vmul.f32 %v468, %v475
    %v477 = vrcp.pop %v474
    %v478 = vmul.f32 %v470, %v477
    %479 = vst [vmem:[%s8] sm:$0xff] %v476
    %480 = vst [vmem:[%s8 + $0x8] sm:$0xff] %v478
    // Predicated region
    $region42: #{bulk_encoder_forward.1} parent=1 // pred_check
      _
    $region43: #{bulk_encoder_forward.1} parent=1 // pred_check_branch
      %482 = sbr.rel (0) target = $region45
    $region44: #{bulk_encoder_forward.1} parent=1 // pred_region
      _
    $region45: #{bulk_encoder_forward.1} parent=1 // pred_fallthru
      _
    // Predicated region
    $region46: #{bulk_encoder_forward.1} parent=1 // pred_check
      _
    $region47: #{bulk_encoder_forward.1} parent=1 // pred_check_branch
      %484 = sbr.rel (0) target = $region49
    $region48: #{bulk_encoder_forward.1} parent=1 // pred_region
      _
    $region49: #{bulk_encoder_forward.1} parent=1 // pred_fallthru
      _
    // Predicated region
    $region50: #{bulk_encoder_forward.1} parent=1 // pred_check
      _
    $region51: #{bulk_encoder_forward.1} parent=1 // pred_check_branch
      %486 = sbr.rel (0) target = $region53
    $region52: #{bulk_encoder_forward.1} parent=1 // pred_region
      _
    $region53: #{bulk_encoder_forward.1} parent=1 // pred_fallthru
      _
    // Predicated region
    $region54: #{bulk_encoder_forward.1} parent=1 // pred_check
      _
    $region55: #{bulk_encoder_forward.1} parent=1 // pred_check_branch
      %488 = sbr.rel (0) target = $region57
    $region56: #{bulk_encoder_forward.1} parent=1 // pred_region
      _
    $region57: #{bulk_encoder_forward.1} parent=1 // pred_fallthru
      _
    %489 = vsyncpa [#allocation3], 1
    %490 = vsyncpa [#allocation5], 1

</llo_original>
